<compile_context>
chip_gen: v6e
topology: v6e:2x2x1
jax: 0.10.0
libtpu: 0.0.40
codegen_flags: <defaults>
</compile_context>

<pallas_src>
import functools

import jax
import jax.numpy as jnp
import numpy as np
from jax import lax
from jax.experimental import pallas as pl
from jax.experimental.pallas import tpu as pltpu


def _cdiv(a, b):
    return -(-a // b)


def _vmem_capacity_bytes():
    """Physical VMEM of the current chip; conservative fallback if unknown."""
    try:
        cap = int(pltpu.get_tpu_info().vmem_capacity_bytes)
        if cap > 0:
            return cap
    except Exception:
        pass
    return 64 * 1024 * 1024          # v7x per-core VMEM (smallest of the three gens)


def _plan(n, c, c_out, l_out, pbytes, obytes, lane_tile=None, co_tile=None):
    """Pick (batch block, C_out block, lane tile, vmem limit) from static shapes."""
    cap = _vmem_capacity_bytes()
    # v5e/v6e (128 MiB): 32 MiB block budget / 96 MiB limit;  v7x (64 MiB): 16 / 48.
    budget = min(cap // 4, 32 * 1024 * 1024)
    vmem_limit = max(32 * 1024 * 1024, min(3 * cap // 4, 96 * 1024 * 1024))

    # Resident weights (three (tco, C) taps + bias), counted x2 in case the
    # constant-index-map inputs are still double-buffered by the pipeline.
    def w_bytes(t):
        return 2 * (3 * t * c * pbytes + t * 4)

    if co_tile is not None:
        assert co_tile == c_out or co_tile % 8 == 0
        tco = co_tile
    else:
        tco = c_out
        if c_out % 8 == 0:
            while tco > 8 and w_bytes(tco) > budget // 2 and (tco // 2) % 8 == 0:
                tco //= 2

    def step_bytes(nb, tl):
        t_cnt = _cdiv(l_out, tl)
        io = 2 * nb * (2 * c * tl * pbytes        # even + odd phase tiles (double-buffered)
                       + t_cnt * c * pbytes       # boundary columns
                       + tco * tl * obytes)       # output tile
        return io + w_bytes(tco)

    if lane_tile is not None:
        assert lane_tile == l_out or lane_tile % 128 == 0
        tl = lane_tile
    else:
        # Prefer one full-width tile (block == full dim needs no 128-alignment),
        # else the largest 128-multiple fitting the budget (128 is the floor).
        tl = 128
        for cand in [l_out] + [t for t in (2048, 1536, 1024, 512, 256, 128) if t < l_out]:
            if step_bytes(1, cand) <= budget:
                tl = cand
                break
        # Keep a few grid steps around so the software pipeline can overlap.
        while (tl % 256 == 0 and tl >= 1024
               and n * _cdiv(c_out, tco) * _cdiv(l_out, tl) < 4):
            tl //= 2

    # Batch blocking: amortize the ~0.35us/grid-step overhead when tiles are tiny.
    nb = 1
    while (nb * 2 <= min(n, 16)
           and step_bytes(nb * 2, tl) <= budget
           and nb * 2 * c * tl * pbytes < 512 * 1024):
        nb *= 2

    return nb, tco, tl, vmem_limit


def _make_kernel(c, nb, tl, t_cnt):
    def kernel(ev_ref, od_ref, evn_ref, w0_ref, w1_ref, w2_ref, b_ref, o_ref):
        # ev_ref/od_ref: (NB, C, TL)    even / odd stride-2 phases of padded input
        # evn_ref:       (NB, T, C, 1)  first even column of the *next* L tile
        # w{0,1,2}_ref:  (TCO, C)       conv taps
        # b_ref:         (TCO, 1)
        # o_ref:         (NB, TCO, TL)
        w0 = w0_ref[...]
        w1 = w1_ref[...]
        w2 = w2_ref[...]
        bias = b_ref[...].astype(jnp.float32)

        evn = evn_ref[...]                                        # (NB, T, C, 1)
        if t_cnt == 1:
            evn_t = evn[:, 0]                                     # (NB, C, 1)
        else:
            evn_t = lax.dynamic_index_in_dim(evn, pl.program_id(2), axis=1,
                                             keepdims=False)      # (NB, C, 1)

        for bb in range(nb):                                      # static unroll, nb <= 16
            ev = ev_ref[bb]                                       # (C, TL) tap-0 operand
            od = od_ref[bb]                                       # (C, TL) tap-1 operand
            nxt = evn_t[bb]                                       # (C, 1)  boundary column
            if tl > 1:
                # tap-2 operand: even phase shifted left by one output column.
                ev2 = jnp.concatenate([ev[:, 1:], nxt], axis=1)   # (C, TL)
            else:
                ev2 = nxt
            acc = jnp.dot(w0, ev, preferred_element_type=jnp.float32)
            acc = acc + jnp.dot(w1, od, preferred_element_type=jnp.float32)
            acc = acc + jnp.dot(w2, ev2, preferred_element_type=jnp.float32)
            o_ref[bb] = (acc + bias).astype(o_ref.dtype)

    return kernel


@functools.partial(jax.jit, static_argnames=("compute_dtype", "lane_tile", "co_tile"))
def downsample1d(x_ncl, weight, bias, *, compute_dtype=None, lane_tile=None, co_tile=None):
    """x_ncl: (N, C, L).  weight: (C_out, C_in, 3).  bias: (C_out,).  Returns (N, C_out, L_out)."""
    n, c, l = x_ncl.shape
    c_out = weight.shape[0]
    assert weight.shape == (c_out, c, 3) and bias.shape == (c_out,)
    l_out = (l - 1) // 2 + 1                      # stride=2, pad=1, k=3
    out_dtype = x_ncl.dtype
    cdt = jnp.dtype(compute_dtype) if compute_dtype is not None else jnp.dtype(out_dtype)
    pbytes = cdt.itemsize
    obytes = jnp.dtype(out_dtype).itemsize

    nb, tco, tl, vmem_limit = _plan(n, c, c_out, l_out, pbytes, obytes, lane_tile, co_tile)
    t_cnt = _cdiv(l_out, tl)
    lp = t_cnt * tl                               # L_out padded to full lane tiles

    # One fused XLA pass over x builds the two stride-2 phases (channels-first,
    # no transposes) plus the tiny per-L-tile boundary columns.
    x_pad = jnp.pad(x_ncl, ((0, 0), (0, 0), (1, 2 * lp - l)))          # (N, C, 2*Lp + 1)
    ev = x_pad[:, :, 0:2 * lp:2].astype(cdt)                            # (N, C, Lp): x_pad[2j]
    od = x_pad[:, :, 1:2 * lp:2].astype(cdt)                            # (N, C, Lp): x_pad[2j+1]
    evn = jnp.transpose(x_pad[:, :, 2 * tl::2 * tl], (0, 2, 1))         # (N, T, C):  x_pad[2*TL*(t+1)]
    evn = evn[..., None].astype(cdt)                                    # (N, T, C, 1)

    w0 = weight[:, :, 0].astype(cdt)
    w1 = weight[:, :, 1].astype(cdt)
    w2 = weight[:, :, 2].astype(cdt)
    b2 = bias.reshape(c_out, 1).astype(jnp.float32)

    grid = (_cdiv(n, nb), _cdiv(c_out, tco), t_cnt)

    cost = pl.CostEstimate(
        flops=2 * n * l_out * c_out * 3 * c,
        transcendentals=0,
        bytes_accessed=((2 * n * c * lp + n * t_cnt * c + 3 * c_out * c) * pbytes
                        + n * c_out * l_out * obytes + c_out * 4),
    )

    out = pl.pallas_call(
        _make_kernel(c, nb, tl, t_cnt),
        out_shape=jax.ShapeDtypeStruct((n, c_out, l_out), out_dtype),
        grid=grid,
        in_specs=[
            pl.BlockSpec((nb, c, tl), lambda bi, ci, ti: (bi, 0, ti)),          # even phase
            pl.BlockSpec((nb, c, tl), lambda bi, ci, ti: (bi, 0, ti)),          # odd phase
            pl.BlockSpec((nb, t_cnt, c, 1), lambda bi, ci, ti: (bi, 0, 0, 0)),  # boundary cols
            pl.BlockSpec((tco, c), lambda bi, ci, ti: (ci, 0)),                 # tap-0 weights
            pl.BlockSpec((tco, c), lambda bi, ci, ti: (ci, 0)),                 # tap-1 weights
            pl.BlockSpec((tco, c), lambda bi, ci, ti: (ci, 0)),                 # tap-2 weights
            pl.BlockSpec((tco, 1), lambda bi, ci, ti: (ci, 0)),                 # bias
        ],
        out_specs=pl.BlockSpec((nb, tco, tl), lambda bi, ci, ti: (bi, ci, ti)),
        compiler_params=pltpu.CompilerParams(
            dimension_semantics=("parallel", "parallel", "parallel"),
            vmem_limit_bytes=vmem_limit),
        cost_estimate=cost,
    )(ev, od, evn, w0, w1, w2, b2)
    return out                                   # (N, C_out, L_out), NCL like PyTorch Conv1d


def _reference_conv1d(x_ncl, weight, bias):
    # Pure-JAX reference (PyTorch Conv1d semantics: stride=2, padding=1, k=3).
    out = lax.conv_general_dilated(
        x_ncl, weight, window_strides=(2,), padding=((1, 1),),
        dimension_numbers=("NCH", "OIH", "NCH"))
    return out + bias[None, :, None]


if __name__ == "__main__":
    root = jax.random.PRNGKey(0)
    k_p1, k_x1, k_p2, k_x2, k_p3, k_x3 = jax.random.split(root, 6)

    def init_params(key, dim):
        # Mirrors PyTorch Conv1d default init: U(-1/sqrt(fan_in), 1/sqrt(fan_in)).
        kw, kb = jax.random.split(key)
        bound = 1.0 / np.sqrt(dim * 3)
        w = jax.random.uniform(kw, (dim, dim, 3), jnp.float32, -bound, bound)
        b = jax.random.uniform(kb, (dim,), jnp.float32, -bound, bound)
        return w, b

    # 1) Primary check: the module's natural small shape (single-tile path).
    batch, dim, length = 2, 4, 16
    w, b = init_params(k_p1, dim)
    x = jax.random.normal(k_x1, (batch, dim, length), jnp.float32)
    out = jax.block_until_ready(downsample1d(x, w, b))
    np.testing.assert_allclose(np.asarray(out), np.asarray(_reference_conv1d(x, w, b)),
                               rtol=1e-5, atol=1e-5)
    assert out.shape == (batch, dim, length // 2)

    # 2) Multi-L-tile path: odd length, forced 128-wide lane tiles (partial last
    #    output block, partial batch block, dynamic boundary-column indexing).
    dim2, length2 = 8, 521
    w2, b2 = init_params(k_p2, dim2)
    x2 = jax.random.normal(k_x2, (3, dim2, length2), jnp.float32)
    out2 = jax.block_until_ready(downsample1d(x2, w2, b2, lane_tile=128))
    np.testing.assert_allclose(np.asarray(out2), np.asarray(_reference_conv1d(x2, w2, b2)),
                               rtol=1e-4, atol=1e-4)
    assert out2.shape == (3, dim2, (length2 - 1) // 2 + 1)

    # 3) bf16 operands + split C_out grid axis (v6e/v7x-oriented options).
    dim3, length3 = 128, 256
    w3, b3 = init_params(k_p3, dim3)
    x3 = jax.random.normal(k_x3, (2, dim3, length3), jnp.float32)
    out3 = jax.block_until_ready(
        downsample1d(x3, w3, b3, compute_dtype=jnp.bfloat16, co_tile=64))
    np.testing.assert_allclose(np.asarray(out3), np.asarray(_reference_conv1d(x3, w3, b3)),
                               rtol=5e-2, atol=5e-2)

    print("KERNEL_OK")
</pallas_src>

<mosaic_0001>
module attributes {stable_mosaic.version = 11 : i64} {
  func.func @kernel(%arg0: i32, %arg1: i32, %arg2: i32, %arg3: memref<2x4x8xf32, #tpu.memory_space<vmem>>, %arg4: memref<2x4x8xf32, #tpu.memory_space<vmem>>, %arg5: memref<2x1x4x1xf32, #tpu.memory_space<vmem>>, %arg6: memref<4x4xf32, #tpu.memory_space<vmem>>, %arg7: memref<4x4xf32, #tpu.memory_space<vmem>>, %arg8: memref<4x4xf32, #tpu.memory_space<vmem>>, %arg9: memref<4x1xf32, #tpu.memory_space<vmem>>, %arg10: memref<2x4x8xf32, #tpu.memory_space<vmem>>) attributes {dimension_semantics = [#tpu.dimension_semantics<parallel>, #tpu.dimension_semantics<parallel>, #tpu.dimension_semantics<parallel>], iteration_bounds = array<i64: 1, 1, 1>, scalar_prefetch = 0 : i64, scratch_operands = 0 : i64, tpu.core_type = #tpu.core_type<tc>, window_params = [{transform_indices = @transform_0, window_bounds = array<i64: 2, 4, 8>}, {transform_indices = @transform_1, window_bounds = array<i64: 2, 4, 8>}, {transform_indices = @transform_2, window_bounds = array<i64: 2, 1, 4, 1>}, {transform_indices = @transform_3, window_bounds = array<i64: 4, 4>}, {transform_indices = @transform_4, window_bounds = array<i64: 4, 4>}, {transform_indices = @transform_5, window_bounds = array<i64: 4, 4>}, {transform_indices = @transform_6, window_bounds = array<i64: 4, 1>}, {transform_indices = @transform_7, window_bounds = array<i64: 2, 4, 8>}]} {
    %c0 = arith.constant 0 : index
    %c0_0 = arith.constant 0 : index
    %0 = vector.load %arg6[%c0, %c0_0] : memref<4x4xf32, #tpu.memory_space<vmem>>, vector<4x4xf32>
    %c0_1 = arith.constant 0 : index
    %c0_2 = arith.constant 0 : index
    %1 = vector.load %arg7[%c0_1, %c0_2] : memref<4x4xf32, #tpu.memory_space<vmem>>, vector<4x4xf32>
    %c0_3 = arith.constant 0 : index
    %c0_4 = arith.constant 0 : index
    %2 = vector.load %arg8[%c0_3, %c0_4] : memref<4x4xf32, #tpu.memory_space<vmem>>, vector<4x4xf32>
    %c0_5 = arith.constant 0 : index
    %c0_6 = arith.constant 0 : index
    %3 = vector.load %arg9[%c0_5, %c0_6] : memref<4x1xf32, #tpu.memory_space<vmem>>, vector<4x1xf32>
    %c0_7 = arith.constant 0 : index
    %c0_8 = arith.constant 0 : index
    %c0_9 = arith.constant 0 : index
    %c0_10 = arith.constant 0 : index
    %4 = vector.load %arg5[%c0_7, %c0_8, %c0_9, %c0_10] : memref<2x1x4x1xf32, #tpu.memory_space<vmem>>, vector<2x1x4x1xf32>
    %5 = vector.shape_cast %4 : vector<2x1x4x1xf32> to vector<2x4x1xf32>
    %c0_11 = arith.constant 0 : index
    %c0_12 = arith.constant 0 : index
    %c0_13 = arith.constant 0 : index
    %6 = vector.load %arg3[%c0_11, %c0_12, %c0_13] : memref<2x4x8xf32, #tpu.memory_space<vmem>>, vector<1x4x8xf32>
    %7 = vector.shape_cast %6 : vector<1x4x8xf32> to vector<4x8xf32>
    %c0_14 = arith.constant 0 : index
    %c0_15 = arith.constant 0 : index
    %c0_16 = arith.constant 0 : index
    %8 = vector.load %arg4[%c0_14, %c0_15, %c0_16] : memref<2x4x8xf32, #tpu.memory_space<vmem>>, vector<1x4x8xf32>
    %9 = vector.shape_cast %8 : vector<1x4x8xf32> to vector<4x8xf32>
    %10 = vector.extract_strided_slice %5 {offsets = [0, 0, 0], sizes = [1, 4, 1], strides = [1, 1, 1]} : vector<2x4x1xf32> to vector<1x4x1xf32>
    %11 = vector.shape_cast %10 : vector<1x4x1xf32> to vector<4x1xf32>
    %12 = vector.extract_strided_slice %7 {offsets = [0, 1], sizes = [4, 7], strides = [1, 1]} : vector<4x8xf32> to vector<4x7xf32>
    %13 = tpu.concatenate %12, %11 in 1 : vector<4x7xf32>, vector<4x1xf32> -> vector<4x8xf32>
    %cst = arith.constant dense<0.000000e+00> : vector<4x8xf32>
    %14 = tpu.matmul %0, %7, %cst {dimension_numbers = #tpu.dot_dimension_numbers<[1], [0], [0], [1], [0, 0, 1, 1], [], []>} : vector<4x4xf32>, vector<4x8xf32>, vector<4x8xf32> -> vector<4x8xf32>
    %cst_17 = arith.constant dense<0.000000e+00> : vector<4x8xf32>
    %15 = tpu.matmul %1, %9, %cst_17 {dimension_numbers = #tpu.dot_dimension_numbers<[1], [0], [0], [1], [0, 0, 1, 1], [], []>} : vector<4x4xf32>, vector<4x8xf32>, vector<4x8xf32> -> vector<4x8xf32>
    %16 = arith.addf %14, %15 : vector<4x8xf32>
    %cst_18 = arith.constant dense<0.000000e+00> : vector<4x8xf32>
    %17 = tpu.matmul %2, %13, %cst_18 {dimension_numbers = #tpu.dot_dimension_numbers<[1], [0], [0], [1], [0, 0, 1, 1], [], []>} : vector<4x4xf32>, vector<4x8xf32>, vector<4x8xf32> -> vector<4x8xf32>
    %18 = arith.addf %16, %17 : vector<4x8xf32>
    %19 = vector.broadcast %3 : vector<4x1xf32> to vector<4x8xf32>
    %20 = arith.addf %18, %19 : vector<4x8xf32>
    %c0_19 = arith.constant 0 : index
    %c0_20 = arith.constant 0 : index
    %c0_21 = arith.constant 0 : index
    %21 = vector.load %arg10[%c0_19, %c0_20, %c0_21] : memref<2x4x8xf32, #tpu.memory_space<vmem>>, vector<1x4x8xf32>
    %22 = vector.shape_cast %21 : vector<1x4x8xf32> to vector<4x8xf32>
    %23 = vector.shape_cast %20 : vector<4x8xf32> to vector<1x4x8xf32>
    tpu.vector_store %arg10[%c0_19, %c0_20, %c0_21], %23 {strides = array<i32>} : memref<2x4x8xf32, #tpu.memory_space<vmem>>, vector<1x4x8xf32>,
    %c1 = arith.constant 1 : index
    %c0_22 = arith.constant 0 : index
    %c0_23 = arith.constant 0 : index
    %24 = vector.load %arg3[%c1, %c0_22, %c0_23] : memref<2x4x8xf32, #tpu.memory_space<vmem>>, vector<1x4x8xf32>
    %25 = vector.shape_cast %24 : vector<1x4x8xf32> to vector<4x8xf32>
    %c1_24 = arith.constant 1 : index
    %c0_25 = arith.constant 0 : index
    %c0_26 = arith.constant 0 : index
    %26 = vector.load %arg4[%c1_24, %c0_25, %c0_26] : memref<2x4x8xf32, #tpu.memory_space<vmem>>, vector<1x4x8xf32>
    %27 = vector.shape_cast %26 : vector<1x4x8xf32> to vector<4x8xf32>
    %28 = vector.extract_strided_slice %5 {offsets = [1, 0, 0], sizes = [1, 4, 1], strides = [1, 1, 1]} : vector<2x4x1xf32> to vector<1x4x1xf32>
    %29 = vector.shape_cast %28 : vector<1x4x1xf32> to vector<4x1xf32>
    %30 = vector.extract_strided_slice %25 {offsets = [0, 1], sizes = [4, 7], strides = [1, 1]} : vector<4x8xf32> to vector<4x7xf32>
    %31 = tpu.concatenate %30, %29 in 1 : vector<4x7xf32>, vector<4x1xf32> -> vector<4x8xf32>
    %cst_27 = arith.constant dense<0.000000e+00> : vector<4x8xf32>
    %32 = tpu.matmul %0, %25, %cst_27 {dimension_numbers = #tpu.dot_dimension_numbers<[1], [0], [0], [1], [0, 0, 1, 1], [], []>} : vector<4x4xf32>, vector<4x8xf32>, vector<4x8xf32> -> vector<4x8xf32>
    %cst_28 = arith.constant dense<0.000000e+00> : vector<4x8xf32>
    %33 = tpu.matmul %1, %27, %cst_28 {dimension_numbers = #tpu.dot_dimension_numbers<[1], [0], [0], [1], [0, 0, 1, 1], [], []>} : vector<4x4xf32>, vector<4x8xf32>, vector<4x8xf32> -> vector<4x8xf32>
    %34 = arith.addf %32, %33 : vector<4x8xf32>
    %cst_29 = arith.constant dense<0.000000e+00> : vector<4x8xf32>
    %35 = tpu.matmul %2, %31, %cst_29 {dimension_numbers = #tpu.dot_dimension_numbers<[1], [0], [0], [1], [0, 0, 1, 1], [], []>} : vector<4x4xf32>, vector<4x8xf32>, vector<4x8xf32> -> vector<4x8xf32>
    %36 = arith.addf %34, %35 : vector<4x8xf32>
    %37 = vector.broadcast %3 : vector<4x1xf32> to vector<4x8xf32>
    %38 = arith.addf %36, %37 : vector<4x8xf32>
    %c1_30 = arith.constant 1 : index
    %c0_31 = arith.constant 0 : index
    %c0_32 = arith.constant 0 : index
    %39 = vector.load %arg10[%c1_30, %c0_31, %c0_32] : memref<2x4x8xf32, #tpu.memory_space<vmem>>, vector<1x4x8xf32>
    %40 = vector.shape_cast %39 : vector<1x4x8xf32> to vector<4x8xf32>
    %41 = vector.shape_cast %38 : vector<4x8xf32> to vector<1x4x8xf32>
    tpu.vector_store %arg10[%c1_30, %c0_31, %c0_32], %41 {strides = array<i32>} : memref<2x4x8xf32, #tpu.memory_space<vmem>>, vector<1x4x8xf32>,
    return
  }
  func.func @transform_0(%arg0: i32, %arg1: i32, %arg2: i32) -> (i32, i32, i32) {
    %c0_i32 = arith.constant 0 : i32
    %c0_i32_0 = arith.constant 0 : i32
    return %arg0, %c0_i32, %arg2 : i32, i32, i32
  }
  func.func @transform_1(%arg0: i32, %arg1: i32, %arg2: i32) -> (i32, i32, i32) {
    %c0_i32 = arith.constant 0 : i32
    %c0_i32_0 = arith.constant 0 : i32
    return %arg0, %c0_i32, %arg2 : i32, i32, i32
  }
  func.func @transform_2(%arg0: i32, %arg1: i32, %arg2: i32) -> (i32, i32, i32, i32) {
    %c0_i32 = arith.constant 0 : i32
    %c0_i32_0 = arith.constant 0 : i32
    %c0_i32_1 = arith.constant 0 : i32
    %c0_i32_2 = arith.constant 0 : i32
    return %arg0, %c0_i32, %c0_i32_0, %c0_i32_1 : i32, i32, i32, i32
  }
  func.func @transform_3(%arg0: i32, %arg1: i32, %arg2: i32) -> (i32, i32) {
    %c0_i32 = arith.constant 0 : i32
    %c0_i32_0 = arith.constant 0 : i32
    return %arg1, %c0_i32 : i32, i32
  }
  func.func @transform_4(%arg0: i32, %arg1: i32, %arg2: i32) -> (i32, i32) {
    %c0_i32 = arith.constant 0 : i32
    %c0_i32_0 = arith.constant 0 : i32
    return %arg1, %c0_i32 : i32, i32
  }
  func.func @transform_5(%arg0: i32, %arg1: i32, %arg2: i32) -> (i32, i32) {
    %c0_i32 = arith.constant 0 : i32
    %c0_i32_0 = arith.constant 0 : i32
    return %arg1, %c0_i32 : i32, i32
  }
  func.func @transform_6(%arg0: i32, %arg1: i32, %arg2: i32) -> (i32, i32) {
    %c0_i32 = arith.constant 0 : i32
    %c0_i32_0 = arith.constant 0 : i32
    return %arg1, %c0_i32 : i32, i32
  }
  func.func @transform_7(%arg0: i32, %arg1: i32, %arg2: i32) -> (i32, i32, i32) {
    %c0_i32 = arith.constant 0 : i32
    return %arg0, %arg1, %arg2 : i32, i32, i32
  }
}

</mosaic_0001>

<llo_original>
// kernel: downsample1d.1
$region0: #{downsample1d.1}
  #allocation0 [shape = 'u32[]', space=smem, size = 0x4, offset = 0x4, fixed_abs, tag = 'smem constant byte address 0x4 - core index']
  #allocation1 [shape = 'u32[144,128]{1,0:T(1,128)}', space=vmem, size = 0x12000, scoped, tag = 'internal scratch']
  %s0 = inlined_call_operand.vmem [shape: f32[2,4,8], index: 0, kind: input, shape index: {}]
  %s1 = inlined_call_operand.vmem [shape: f32[2,4,8], index: 1, kind: input, shape index: {}]
  %s2 = inlined_call_operand.vmem [shape: f32[2,1,4,1], index: 2, kind: input, shape index: {}]
  %s3 = inlined_call_operand.vmem [shape: f32[4,4], index: 3, kind: input, shape index: {}]
  %s4 = inlined_call_operand.vmem [shape: f32[4,4], index: 4, kind: input, shape index: {}]
  %s5 = inlined_call_operand.vmem [shape: f32[4,4], index: 5, kind: input, shape index: {}]
  %s6 = inlined_call_operand.vmem [shape: f32[4,1], index: 6, kind: input, shape index: {}]
  %s7 = inlined_call_operand.hbm [shape: f32[2,4,8], index: 7, kind: output, shape index: {}]
  %s8 = sld [smem:[#allocation0]]
  $region38: #{downsample1d.1} parent=0
    _
  %s10 = ssub.s32 1, %s8
  %s11 = scalar_select 0, %s10, %s8
  $region1: #{downsample1d.1} parent=0
    #allocation2 [shape = 'u8[4096]{0}', space=vmem, size = 0x1000, scoped, tag = 'output window, operand 0, single buffered']
    #allocation3 [shape = 's32[1]{0}', space=sflag, size = 0x4, scoped, tag = 'scoped memory for downsample1d.1']
    %12 = vsyncpa [#allocation3], 0
    // Predicated region
    $region2: #{downsample1d.1} parent=1 // pred_check
      _
    $region3: #{downsample1d.1} parent=1 // pred_check_branch
      %14 = sbr.rel (0) target = $region5
    $region4: #{downsample1d.1} parent=1 // pred_region
      _
    $region5: #{downsample1d.1} parent=1 // pred_fallthru
      _
    // Predicated region
    $region6: #{downsample1d.1} parent=1 // pred_check
      _
    $region7: #{downsample1d.1} parent=1 // pred_check_branch
      %16 = sbr.rel (0) target = $region9
    $region8: #{downsample1d.1} parent=1 // pred_region
      _
    $region9: #{downsample1d.1} parent=1 // pred_fallthru
      _
    // Predicated region
    $region10: #{downsample1d.1} parent=1 // pred_check
      _
    $region11: #{downsample1d.1} parent=1 // pred_check_branch
      %18 = sbr.rel (0) target = $region13
    $region12: #{downsample1d.1} parent=1 // pred_region
      _
    $region13: #{downsample1d.1} parent=1 // pred_fallthru
      _
    // Predicated region
    $region14: #{downsample1d.1} parent=1 // pred_check
      _
    $region15: #{downsample1d.1} parent=1 // pred_check_branch
      %20 = sbr.rel (0) target = $region17
    $region16: #{downsample1d.1} parent=1 // pred_region
      _
    $region17: #{downsample1d.1} parent=1 // pred_fallthru
      _
    // Predicated region
    $region18: #{downsample1d.1} parent=1 // pred_check
      _
    $region19: #{downsample1d.1} parent=1 // pred_check_branch
      %22 = sbr.rel (0) target = $region21
    $region20: #{downsample1d.1} parent=1 // pred_region
      _
    $region21: #{downsample1d.1} parent=1 // pred_fallthru
      _
    // Predicated region
    $region22: #{downsample1d.1} parent=1 // pred_check
      _
    $region23: #{downsample1d.1} parent=1 // pred_check_branch
      %24 = sbr.rel (0) target = $region25
    $region24: #{downsample1d.1} parent=1 // pred_region
      _
    $region25: #{downsample1d.1} parent=1 // pred_fallthru
      _
    // Predicated region
    $region26: #{downsample1d.1} parent=1 // pred_check
      _
    $region27: #{downsample1d.1} parent=1 // pred_check_branch
      %26 = sbr.rel (0) target = $region29
    $region28: #{downsample1d.1} parent=1 // pred_region
      _
    $region29: #{downsample1d.1} parent=1 // pred_fallthru
      _
    %v27 = vld [vmem:[%s3] sm:$0xf]
    %v28 = vld [vmem:[%s4] sm:$0xf]
    %v29 = vld [vmem:[%s5] sm:$0xf]
    %v30 = vld [vmem:[%s6] sm:$0xf]
    %v31 = vld [vmem:[%s2] sm:$0xf]
    %v32 = vld [vmem:[%s2 + $0x4] sm:$0xf]
    %v33 = vld [vmem:[%s0] sm:$0xf]
    %v34 = vld [vmem:[%s1] sm:$0xf]
    %36 = vrot.lane.b32.xlu0 %v33, 127
    %v37 = vpop.permute.xlu0 %36
    %40 = vrot.lane.b32.xlu0 %v31, 7
    %v41 = vpop.permute.xlu0 %40
    %vm43 = vcmask 56320
    %v44 = vsel %vm43, %v37, %v41
    %vm45 = vcmask 31744
    %v47 = vsel %vm45, %v28, 0
    %vm49 = vcmask 1043456
    %v51 = vsel %vm49, %v34, 0
    %53 = vmatprep.subr.mxu0 0.0
    %54 = vmatpush1.msra.mxu0 0.0
    %55 = vmatprep.subr.mxu0 0.0
    %56 = vmatpush1.msra.mxu0 0.0
    %57 = vmatprep.subr.mxu0 0.0
    %58 = vmatpush1.msra.mxu0 0.0
    %59 = vmatprep.subr.mxu0 0.0
    %60 = vmatpush1.msra.mxu0 0.0
    %61 = vmatprep.subr.mxu0 0.0
    %62 = vmatpush1.msra.mxu0 0.0
    %63 = vmatprep.subr.mxu0 0.0
    %64 = vmatpush1.msra.mxu0 0.0
    %65 = vmatprep.subr.mxu0 0.0
    %66 = vmatpush1.msra.mxu0 0.0
    %67 = vmatprep.subr.mxu0 0.0
    %68 = vmatpush1.msra.mxu0 0.0
    %69 = vmatprep.subr.mxu0 0.0
    %70 = vmatpush1.msra.mxu0 0.0
    %71 = vmatprep.subr.mxu0 0.0
    %72 = vmatpush1.msra.mxu0 0.0
    %73 = vmatprep.subr.mxu0 0.0
    %74 = vmatpush1.msra.mxu0 0.0
    %75 = vmatprep.subr.mxu0 0.0
    %76 = vmatpush1.msra.mxu0 0.0
    %77 = vmatprep.subr.mxu0 0.0
    %78 = vmatpush1.msra.mxu0 0.0
    %79 = vmatprep.subr.mxu0 0.0
    %80 = vmatpush1.msra.mxu0 0.0
    %81 = vmatprep.subr.mxu0 0.0
    %82 = vmatpush1.msra.mxu0 0.0
    %83 = vmatprep.subr.mxu0 0.0
    %84 = vmatpush1.msra.mxu0 %v51
    %85 = vmatprep.subr.mxu0 0.0
    %86 = vmatpush2.msra.mxu0 0.0
    %87 = vmatprep.subr.mxu0 0.0
    %88 = vmatpush2.msra.mxu0 0.0
    %89 = vmatprep.subr.mxu0 0.0
    %90 = vmatpush2.msra.mxu0 0.0
    %91 = vmatprep.subr.mxu0 0.0
    %92 = vmatpush2.msra.mxu0 0.0
    %93 = vmatprep.subr.mxu0 0.0
    %94 = vmatpush2.msra.mxu0 0.0
    %95 = vmatprep.subr.mxu0 0.0
    %96 = vmatpush2.msra.mxu0 0.0
    %97 = vmatprep.subr.mxu0 0.0
    %98 = vmatpush2.msra.mxu0 0.0
    %99 = vmatprep.subr.mxu0 0.0
    %100 = vmatpush2.msra.mxu0 0.0
    %101 = vmatprep.subr.mxu0 0.0
    %102 = vmatpush2.msra.mxu0 0.0
    %103 = vmatprep.subr.mxu0 0.0
    %104 = vmatpush2.msra.mxu0 0.0
    %105 = vmatprep.subr.mxu0 0.0
    %106 = vmatpush2.msra.mxu0 0.0
    %107 = vmatprep.subr.mxu0 0.0
    %108 = vmatpush2.msra.mxu0 0.0
    %109 = vmatprep.subr.mxu0 0.0
    %110 = vmatpush2.msra.mxu0 0.0
    %111 = vmatprep.subr.mxu0 0.0
    %112 = vmatpush2.msra.mxu0 0.0
    %113 = vmatprep.subr.mxu0 0.0
    %114 = vmatpush2.msra.mxu0 0.0
    %115 = vmatprep.subr.mxu0 0.0
    %116 = vmatpush2.msra.mxu0 0.0
    %117 = vmatprep.mubr.f32.mxu0 0.0
    %118 = vmatmul.mubr.f32.gmra.mxu0 %v47
    %v119 = vpop.f32.mrf.mxu0
    %v120 = vadd.f32 0.0, %v119
    %v121 = vpop.f32.mrf.mxu0
    %122 = vdwg.mxu0
    %v124 = vsel %vm45, %v27, 0
    %v126 = vsel %vm49, %v33, 0
    %128 = vmatprep.subr.mxu0 0.0
    %129 = vmatpush1.msra.mxu0 0.0
    %130 = vmatprep.subr.mxu0 0.0
    %131 = vmatpush1.msra.mxu0 0.0
    %132 = vmatprep.subr.mxu0 0.0
    %133 = vmatpush1.msra.mxu0 0.0
    %134 = vmatprep.subr.mxu0 0.0
    %135 = vmatpush1.msra.mxu0 0.0
    %136 = vmatprep.subr.mxu0 0.0
    %137 = vmatpush1.msra.mxu0 0.0
    %138 = vmatprep.subr.mxu0 0.0
    %139 = vmatpush1.msra.mxu0 0.0
    %140 = vmatprep.subr.mxu0 0.0
    %141 = vmatpush1.msra.mxu0 0.0
    %142 = vmatprep.subr.mxu0 0.0
    %143 = vmatpush1.msra.mxu0 0.0
    %144 = vmatprep.subr.mxu0 0.0
    %145 = vmatpush1.msra.mxu0 0.0
    %146 = vmatprep.subr.mxu0 0.0
    %147 = vmatpush1.msra.mxu0 0.0
    %148 = vmatprep.subr.mxu0 0.0
    %149 = vmatpush1.msra.mxu0 0.0
    %150 = vmatprep.subr.mxu0 0.0
    %151 = vmatpush1.msra.mxu0 0.0
    %152 = vmatprep.subr.mxu0 0.0
    %153 = vmatpush1.msra.mxu0 0.0
    %154 = vmatprep.subr.mxu0 0.0
    %155 = vmatpush1.msra.mxu0 0.0
    %156 = vmatprep.subr.mxu0 0.0
    %157 = vmatpush1.msra.mxu0 0.0
    %158 = vmatprep.subr.mxu0 0.0
    %159 = vmatpush1.msra.mxu0 %v126
    %160 = vmatprep.subr.mxu0 0.0
    %161 = vmatpush2.msra.mxu0 0.0
    %162 = vmatprep.subr.mxu0 0.0
    %163 = vmatpush2.msra.mxu0 0.0
    %164 = vmatprep.subr.mxu0 0.0
    %165 = vmatpush2.msra.mxu0 0.0
    %166 = vmatprep.subr.mxu0 0.0
    %167 = vmatpush2.msra.mxu0 0.0
    %168 = vmatprep.subr.mxu0 0.0
    %169 = vmatpush2.msra.mxu0 0.0
    %170 = vmatprep.subr.mxu0 0.0
    %171 = vmatpush2.msra.mxu0 0.0
    %172 = vmatprep.subr.mxu0 0.0
    %173 = vmatpush2.msra.mxu0 0.0
    %174 = vmatprep.subr.mxu0 0.0
    %175 = vmatpush2.msra.mxu0 0.0
    %176 = vmatprep.subr.mxu0 0.0
    %177 = vmatpush2.msra.mxu0 0.0
    %178 = vmatprep.subr.mxu0 0.0
    %179 = vmatpush2.msra.mxu0 0.0
    %180 = vmatprep.subr.mxu0 0.0
    %181 = vmatpush2.msra.mxu0 0.0
    %182 = vmatprep.subr.mxu0 0.0
    %183 = vmatpush2.msra.mxu0 0.0
    %184 = vmatprep.subr.mxu0 0.0
    %185 = vmatpush2.msra.mxu0 0.0
    %186 = vmatprep.subr.mxu0 0.0
    %187 = vmatpush2.msra.mxu0 0.0
    %188 = vmatprep.subr.mxu0 0.0
    %189 = vmatpush2.msra.mxu0 0.0
    %190 = vmatprep.subr.mxu0 0.0
    %191 = vmatpush2.msra.mxu0 0.0
    %192 = vmatprep.mubr.f32.mxu0 0.0
    %193 = vmatmul.mubr.f32.gmra.mxu0 %v124
    %v194 = vpop.f32.mrf.mxu0
    %v195 = vadd.f32 %v120, %v194
    %v196 = vpop.f32.mrf.mxu0
    %197 = vdwg.mxu0
    %v199 = vsel %vm45, %v29, 0
    %v202 = vsel %vm49, %v44, 0
    %204 = vmatprep.subr.mxu0 0.0
    %205 = vmatpush1.msra.mxu0 0.0
    %206 = vmatprep.subr.mxu0 0.0
    %207 = vmatpush1.msra.mxu0 0.0
    %208 = vmatprep.subr.mxu0 0.0
    %209 = vmatpush1.msra.mxu0 0.0
    %210 = vmatprep.subr.mxu0 0.0
    %211 = vmatpush1.msra.mxu0 0.0
    %212 = vmatprep.subr.mxu0 0.0
    %213 = vmatpush1.msra.mxu0 0.0
    %214 = vmatprep.subr.mxu0 0.0
    %215 = vmatpush1.msra.mxu0 0.0
    %216 = vmatprep.subr.mxu0 0.0
    %217 = vmatpush1.msra.mxu0 0.0
    %218 = vmatprep.subr.mxu0 0.0
    %219 = vmatpush1.msra.mxu0 0.0
    %220 = vmatprep.subr.mxu0 0.0
    %221 = vmatpush1.msra.mxu0 0.0
    %222 = vmatprep.subr.mxu0 0.0
    %223 = vmatpush1.msra.mxu0 0.0
    %224 = vmatprep.subr.mxu0 0.0
    %225 = vmatpush1.msra.mxu0 0.0
    %226 = vmatprep.subr.mxu0 0.0
    %227 = vmatpush1.msra.mxu0 0.0
    %228 = vmatprep.subr.mxu0 0.0
    %229 = vmatpush1.msra.mxu0 0.0
    %230 = vmatprep.subr.mxu0 0.0
    %231 = vmatpush1.msra.mxu0 0.0
    %232 = vmatprep.subr.mxu0 0.0
    %233 = vmatpush1.msra.mxu0 0.0
    %234 = vmatprep.subr.mxu0 0.0
    %235 = vmatpush1.msra.mxu0 %v202
    %236 = vmatprep.subr.mxu0 0.0
    %237 = vmatpush2.msra.mxu0 0.0
    %238 = vmatprep.subr.mxu0 0.0
    %239 = vmatpush2.msra.mxu0 0.0
    %240 = vmatprep.subr.mxu0 0.0
    %241 = vmatpush2.msra.mxu0 0.0
    %242 = vmatprep.subr.mxu0 0.0
    %243 = vmatpush2.msra.mxu0 0.0
    %244 = vmatprep.subr.mxu0 0.0
    %245 = vmatpush2.msra.mxu0 0.0
    %246 = vmatprep.subr.mxu0 0.0
    %247 = vmatpush2.msra.mxu0 0.0
    %248 = vmatprep.subr.mxu0 0.0
    %249 = vmatpush2.msra.mxu0 0.0
    %250 = vmatprep.subr.mxu0 0.0
    %251 = vmatpush2.msra.mxu0 0.0
    %252 = vmatprep.subr.mxu0 0.0
    %253 = vmatpush2.msra.mxu0 0.0
    %254 = vmatprep.subr.mxu0 0.0
    %255 = vmatpush2.msra.mxu0 0.0
    %256 = vmatprep.subr.mxu0 0.0
    %257 = vmatpush2.msra.mxu0 0.0
    %258 = vmatprep.subr.mxu0 0.0
    %259 = vmatpush2.msra.mxu0 0.0
    %260 = vmatprep.subr.mxu0 0.0
    %261 = vmatpush2.msra.mxu0 0.0
    %262 = vmatprep.subr.mxu0 0.0
    %263 = vmatpush2.msra.mxu0 0.0
    %264 = vmatprep.subr.mxu0 0.0
    %265 = vmatpush2.msra.mxu0 0.0
    %266 = vmatprep.subr.mxu0 0.0
    %267 = vmatpush2.msra.mxu0 0.0
    %268 = vmatprep.mubr.f32.mxu0 0.0
    %269 = vmatmul.mubr.f32.gmra.mxu0 %v199
    %v270 = vpop.f32.mrf.mxu0
    %v271 = vadd.f32 0.0, %v270
    %v272 = vpop.f32.mrf.mxu0
    %273 = vdwg.mxu0
    %v274 = vadd.f32 %v195, %v271
    %276 = vset.pattern.permute.xlu0 0
    %277 = vperm.xlu0 %276, %v30
    %v278 = vpop.permute.xlu0 %277
    %v280 = vadd.f32 %v274, %v278
    %vm281 = vcmask 60416
    %282 = vst.msk [vmem:[#allocation2] sm:$0xf] %vm281, %v280
    %s283 = scalar_lea.vmem %s0, 4
    %v284 = vld [vmem:[%s283] sm:$0xf]
    %s285 = scalar_lea.vmem %s1, 4
    %v286 = vld [vmem:[%s285] sm:$0xf]
    %288 = vrot.lane.b32.xlu0 %v284, 127
    %v289 = vpop.permute.xlu0 %288
    %292 = vrot.lane.b32.xlu0 %v32, 7
    %v293 = vpop.permute.xlu0 %292
    %v295 = vsel %vm43, %v289, %v293
    %v297 = vsel %vm49, %v286, 0
    %299 = vmatprep.subr.mxu0 0.0
    %300 = vmatpush1.msra.mxu0 0.0
    %301 = vmatprep.subr.mxu0 0.0
    %302 = vmatpush1.msra.mxu0 0.0
    %303 = vmatprep.subr.mxu0 0.0
    %304 = vmatpush1.msra.mxu0 0.0
    %305 = vmatprep.subr.mxu0 0.0
    %306 = vmatpush1.msra.mxu0 0.0
    %307 = vmatprep.subr.mxu0 0.0
    %308 = vmatpush1.msra.mxu0 0.0
    %309 = vmatprep.subr.mxu0 0.0
    %310 = vmatpush1.msra.mxu0 0.0
    %311 = vmatprep.subr.mxu0 0.0
    %312 = vmatpush1.msra.mxu0 0.0
    %313 = vmatprep.subr.mxu0 0.0
    %314 = vmatpush1.msra.mxu0 0.0
    %315 = vmatprep.subr.mxu0 0.0
    %316 = vmatpush1.msra.mxu0 0.0
    %317 = vmatprep.subr.mxu0 0.0
    %318 = vmatpush1.msra.mxu0 0.0
    %319 = vmatprep.subr.mxu0 0.0
    %320 = vmatpush1.msra.mxu0 0.0
    %321 = vmatprep.subr.mxu0 0.0
    %322 = vmatpush1.msra.mxu0 0.0
    %323 = vmatprep.subr.mxu0 0.0
    %324 = vmatpush1.msra.mxu0 0.0
    %325 = vmatprep.subr.mxu0 0.0
    %326 = vmatpush1.msra.mxu0 0.0
    %327 = vmatprep.subr.mxu0 0.0
    %328 = vmatpush1.msra.mxu0 0.0
    %329 = vmatprep.subr.mxu0 0.0
    %330 = vmatpush1.msra.mxu0 %v297
    %331 = vmatprep.subr.mxu0 0.0
    %332 = vmatpush2.msra.mxu0 0.0
    %333 = vmatprep.subr.mxu0 0.0
    %334 = vmatpush2.msra.mxu0 0.0
    %335 = vmatprep.subr.mxu0 0.0
    %336 = vmatpush2.msra.mxu0 0.0
    %337 = vmatprep.subr.mxu0 0.0
    %338 = vmatpush2.msra.mxu0 0.0
    %339 = vmatprep.subr.mxu0 0.0
    %340 = vmatpush2.msra.mxu0 0.0
    %341 = vmatprep.subr.mxu0 0.0
    %342 = vmatpush2.msra.mxu0 0.0
    %343 = vmatprep.subr.mxu0 0.0
    %344 = vmatpush2.msra.mxu0 0.0
    %345 = vmatprep.subr.mxu0 0.0
    %346 = vmatpush2.msra.mxu0 0.0
    %347 = vmatprep.subr.mxu0 0.0
    %348 = vmatpush2.msra.mxu0 0.0
    %349 = vmatprep.subr.mxu0 0.0
    %350 = vmatpush2.msra.mxu0 0.0
    %351 = vmatprep.subr.mxu0 0.0
    %352 = vmatpush2.msra.mxu0 0.0
    %353 = vmatprep.subr.mxu0 0.0
    %354 = vmatpush2.msra.mxu0 0.0
    %355 = vmatprep.subr.mxu0 0.0
    %356 = vmatpush2.msra.mxu0 0.0
    %357 = vmatprep.subr.mxu0 0.0
    %358 = vmatpush2.msra.mxu0 0.0
    %359 = vmatprep.subr.mxu0 0.0
    %360 = vmatpush2.msra.mxu0 0.0
    %361 = vmatprep.subr.mxu0 0.0
    %362 = vmatpush2.msra.mxu0 0.0
    %363 = vmatprep.mubr.f32.mxu0 0.0
    %364 = vmatmul.mubr.f32.gmra.mxu0 %v47
    %v365 = vpop.f32.mrf.mxu0
    %v366 = vadd.f32 0.0, %v365
    %v367 = vpop.f32.mrf.mxu0
    %368 = vdwg.mxu0
    %v369 = vsel %vm49, %v284, 0
    %371 = vmatprep.subr.mxu0 0.0
    %372 = vmatpush1.msra.mxu0 0.0
    %373 = vmatprep.subr.mxu0 0.0
    %374 = vmatpush1.msra.mxu0 0.0
    %375 = vmatprep.subr.mxu0 0.0
    %376 = vmatpush1.msra.mxu0 0.0
    %377 = vmatprep.subr.mxu0 0.0
    %378 = vmatpush1.msra.mxu0 0.0
    %379 = vmatprep.subr.mxu0 0.0
    %380 = vmatpush1.msra.mxu0 0.0
    %381 = vmatprep.subr.mxu0 0.0
    %382 = vmatpush1.msra.mxu0 0.0
    %383 = vmatprep.subr.mxu0 0.0
    %384 = vmatpush1.msra.mxu0 0.0
    %385 = vmatprep.subr.mxu0 0.0
    %386 = vmatpush1.msra.mxu0 0.0
    %387 = vmatprep.subr.mxu0 0.0
    %388 = vmatpush1.msra.mxu0 0.0
    %389 = vmatprep.subr.mxu0 0.0
    %390 = vmatpush1.msra.mxu0 0.0
    %391 = vmatprep.subr.mxu0 0.0
    %392 = vmatpush1.msra.mxu0 0.0
    %393 = vmatprep.subr.mxu0 0.0
    %394 = vmatpush1.msra.mxu0 0.0
    %395 = vmatprep.subr.mxu0 0.0
    %396 = vmatpush1.msra.mxu0 0.0
    %397 = vmatprep.subr.mxu0 0.0
    %398 = vmatpush1.msra.mxu0 0.0
    %399 = vmatprep.subr.mxu0 0.0
    %400 = vmatpush1.msra.mxu0 0.0
    %401 = vmatprep.subr.mxu0 0.0
    %402 = vmatpush1.msra.mxu0 %v369
    %403 = vmatprep.subr.mxu0 0.0
    %404 = vmatpush2.msra.mxu0 0.0
    %405 = vmatprep.subr.mxu0 0.0
    %406 = vmatpush2.msra.mxu0 0.0
    %407 = vmatprep.subr.mxu0 0.0
    %408 = vmatpush2.msra.mxu0 0.0
    %409 = vmatprep.subr.mxu0 0.0
    %410 = vmatpush2.msra.mxu0 0.0
    %411 = vmatprep.subr.mxu0 0.0
    %412 = vmatpush2.msra.mxu0 0.0
    %413 = vmatprep.subr.mxu0 0.0
    %414 = vmatpush2.msra.mxu0 0.0
    %415 = vmatprep.subr.mxu0 0.0
    %416 = vmatpush2.msra.mxu0 0.0
    %417 = vmatprep.subr.mxu0 0.0
    %418 = vmatpush2.msra.mxu0 0.0
    %419 = vmatprep.subr.mxu0 0.0
    %420 = vmatpush2.msra.mxu0 0.0
    %421 = vmatprep.subr.mxu0 0.0
    %422 = vmatpush2.msra.mxu0 0.0
    %423 = vmatprep.subr.mxu0 0.0
    %424 = vmatpush2.msra.mxu0 0.0
    %425 = vmatprep.subr.mxu0 0.0
    %426 = vmatpush2.msra.mxu0 0.0
    %427 = vmatprep.subr.mxu0 0.0
    %428 = vmatpush2.msra.mxu0 0.0
    %429 = vmatprep.subr.mxu0 0.0
    %430 = vmatpush2.msra.mxu0 0.0
    %431 = vmatprep.subr.mxu0 0.0
    %432 = vmatpush2.msra.mxu0 0.0
    %433 = vmatprep.subr.mxu0 0.0
    %434 = vmatpush2.msra.mxu0 0.0
    %435 = vmatprep.mubr.f32.mxu0 0.0
    %436 = vmatmul.mubr.f32.gmra.mxu0 %v124
    %v437 = vpop.f32.mrf.mxu0
    %v438 = vadd.f32 %v366, %v437
    %v439 = vpop.f32.mrf.mxu0
    %440 = vdwg.mxu0
    %v442 = vsel %vm49, %v295, 0
    %444 = vmatprep.subr.mxu0 0.0
    %445 = vmatpush1.msra.mxu0 0.0
    %446 = vmatprep.subr.mxu0 0.0
    %447 = vmatpush1.msra.mxu0 0.0
    %448 = vmatprep.subr.mxu0 0.0
    %449 = vmatpush1.msra.mxu0 0.0
    %450 = vmatprep.subr.mxu0 0.0
    %451 = vmatpush1.msra.mxu0 0.0
    %452 = vmatprep.subr.mxu0 0.0
    %453 = vmatpush1.msra.mxu0 0.0
    %454 = vmatprep.subr.mxu0 0.0
    %455 = vmatpush1.msra.mxu0 0.0
    %456 = vmatprep.subr.mxu0 0.0
    %457 = vmatpush1.msra.mxu0 0.0
    %458 = vmatprep.subr.mxu0 0.0
    %459 = vmatpush1.msra.mxu0 0.0
    %460 = vmatprep.subr.mxu0 0.0
    %461 = vmatpush1.msra.mxu0 0.0
    %462 = vmatprep.subr.mxu0 0.0
    %463 = vmatpush1.msra.mxu0 0.0
    %464 = vmatprep.subr.mxu0 0.0
    %465 = vmatpush1.msra.mxu0 0.0
    %466 = vmatprep.subr.mxu0 0.0
    %467 = vmatpush1.msra.mxu0 0.0
    %468 = vmatprep.subr.mxu0 0.0
    %469 = vmatpush1.msra.mxu0 0.0
    %470 = vmatprep.subr.mxu0 0.0
    %471 = vmatpush1.msra.mxu0 0.0
    %472 = vmatprep.subr.mxu0 0.0
    %473 = vmatpush1.msra.mxu0 0.0
    %474 = vmatprep.subr.mxu0 0.0
    %475 = vmatpush1.msra.mxu0 %v442
    %476 = vmatprep.subr.mxu0 0.0
    %477 = vmatpush2.msra.mxu0 0.0
    %478 = vmatprep.subr.mxu0 0.0
    %479 = vmatpush2.msra.mxu0 0.0
    %480 = vmatprep.subr.mxu0 0.0
    %481 = vmatpush2.msra.mxu0 0.0
    %482 = vmatprep.subr.mxu0 0.0
    %483 = vmatpush2.msra.mxu0 0.0
    %484 = vmatprep.subr.mxu0 0.0
    %485 = vmatpush2.msra.mxu0 0.0
    %486 = vmatprep.subr.mxu0 0.0
    %487 = vmatpush2.msra.mxu0 0.0
    %488 = vmatprep.subr.mxu0 0.0
    %489 = vmatpush2.msra.mxu0 0.0
    %490 = vmatprep.subr.mxu0 0.0
    %491 = vmatpush2.msra.mxu0 0.0
    %492 = vmatprep.subr.mxu0 0.0
    %493 = vmatpush2.msra.mxu0 0.0
    %494 = vmatprep.subr.mxu0 0.0
    %495 = vmatpush2.msra.mxu0 0.0
    %496 = vmatprep.subr.mxu0 0.0
    %497 = vmatpush2.msra.mxu0 0.0
    %498 = vmatprep.subr.mxu0 0.0
    %499 = vmatpush2.msra.mxu0 0.0
    %500 = vmatprep.subr.mxu0 0.0
    %501 = vmatpush2.msra.mxu0 0.0
    %502 = vmatprep.subr.mxu0 0.0
    %503 = vmatpush2.msra.mxu0 0.0
    %504 = vmatprep.subr.mxu0 0.0
    %505 = vmatpush2.msra.mxu0 0.0
    %506 = vmatprep.subr.mxu0 0.0
    %507 = vmatpush2.msra.mxu0 0.0
    %508 = vmatprep.mubr.f32.mxu0 0.0
    %509 = vmatmul.mubr.f32.gmra.mxu0 %v199
    %v510 = vpop.f32.mrf.mxu0
    %v511 = vadd.f32 0.0, %v510
    %v512 = vpop.f32.mrf.mxu0
    %513 = vdwg.mxu0
    %v514 = vadd.f32 %v438, %v511
    %v515 = vadd.f32 %v514, %v278
    %s516 = scalar_lea.vmem [#allocation2], 4
    %517 = vst.msk [vmem:[%s516] sm:$0xf] %vm281, %v515
    // Predicated region
    $region30: #{downsample1d.1} parent=1 // pred_check
      _
    $region31: #{downsample1d.1} parent=1 // pred_check_branch
      %519 = sbr.rel (0) target = $region33
    $region32: #{downsample1d.1} parent=1 // pred_region
      %s521 = ssub.s32 128, 128
      %522 = vsyncadd [#allocation3], %s521
      %s523 = sshll.u32 [#allocation2], 4
      %s524 = int_to_ptr.vmem [resolvable:$true] %s523
      %529 = dma.vmem_to_hbm [thread:$0]  %s524, 128, %s7, [#allocation3], 64, 64, 4
    $region33: #{downsample1d.1} parent=1 // pred_fallthru
      _
    // Predicated region
    $region34: #{downsample1d.1} parent=1 // pred_check
      _
    $region35: #{downsample1d.1} parent=1 // pred_check_branch
      %531 = sbr.rel (0) target = $region37
    $region36: #{downsample1d.1} parent=1 // pred_region
      %532 = dma.done [#allocation3], 128
    $region37: #{downsample1d.1} parent=1 // pred_fallthru
      _
    %533 = vsyncpa [#allocation3], 1

</llo_original>
